<compile_context>
chip_gen: v5e
topology: v5e:2x2
jax: 0.10.0
libtpu: 0.0.40
codegen_flags: <defaults>
</compile_context>

<pallas_src>
import jax
import jax.numpy as jnp
from jax.experimental import pallas as pl
from jax.experimental.pallas import tpu as pltpu


IN_F, H1, H2, OUT_F = 4, 8, 9, 3
HID = 16                  # padded hidden width (lanes) for h1 / h2
OUT_PAD = 8               # padded output width (last dim of the out array)
SLAB_ROWS = 48            # 8 (fc1 w) + 8 (fc1 bias/carry row) + 16 (fc2) + 16 (out)
SLAB_COLS = 128
TILE_B_MAX = 2048         # batch tile (multiple of 256 for large batches)


def _round_up(n, m):
    return ((n + m - 1) // m) * m


def mlp_kernel(x_ref, p_ref, o_ref):
    # x_ref: [TILE_B, 4]   raw features (ragged last block: OOB rows are garbage)
    # p_ref: [48, 128]     packed parameter slab, VMEM-resident across grid steps
    # o_ref: [TILE_B, 8]   logits live in cols 0..2 (OOB rows' writes are dropped)
    x = x_ref[...]

    w1  = p_ref[0:IN_F, 0:HID]      # [4, 16]  fc1 weights (cols 0..7)
    b1e = p_ref[8:9, 0:HID]         # [1, 16]  fc1 bias (cols 0..7) + carry seed 1.0 at col 8
    w2  = p_ref[16:32, 0:HID]       # [16, 16] fc2 weights + b2 (local row 8) + carry at col 9
    w3  = p_ref[32:48, 0:OUT_PAD]   # [16, 8]  out weights + b3 (local row 9)

    h1 = jnp.maximum(
        jnp.dot(x, w1, preferred_element_type=jnp.float32) + b1e, 0.0)
    h2 = jnp.maximum(
        jnp.dot(h1, w2, preferred_element_type=jnp.float32), 0.0)
    o_ref[...] = jnp.dot(h2, w3, preferred_element_type=jnp.float32)


def pack_params(w1, b1, w2, b2, w3, b3):
    """w*: [in, out] (PyTorch weight transposed), b*: [out].

    Returns one lane-dense [48, 128] f32 slab. The fc1 bias row also seeds a
    constant +1.0 "carry" column (h1[:,8]); fc2 forwards it to h2[:,9]; each
    later block uses that column's row as its bias row, so fc2/out biases are
    folded into the matmuls."""
    slab = jnp.zeros((SLAB_ROWS, SLAB_COLS), jnp.float32)
    # fc1 weight block: rows [0,4), cols [0,8)
    slab = slab.at[0:IN_F, 0:H1].set(w1)
    # fc1 extended bias row (row 8): b1 in cols 0..7, carry seed at col 8
    slab = slab.at[8, 0:H1].set(b1.reshape(-1))
    slab = slab.at[8, H1].set(1.0)
    # fc2 block: rows [16,32); local row r <-> h1 column r
    slab = slab.at[16:16 + H1, 0:H2].set(w2)          # rows 16..23
    slab = slab.at[16 + H1, 0:H2].set(b2.reshape(-1)) # local row 8 = bias (hit by carry)
    slab = slab.at[16 + H1, H2].set(1.0)              # forward carry into h2[:, 9]
    # out block: rows [32,48); local row r <-> h2 column r
    slab = slab.at[32:32 + H2, 0:OUT_F].set(w3)           # rows 32..40
    slab = slab.at[32 + H2, 0:OUT_F].set(b3.reshape(-1))  # local row 9 = bias
    return slab


def _choose_tile(B, tile_b_max):
    """Batch tile: multiple of 8, <= tile_b_max, and >= 2 grid steps for
    larger batches so both v7x TensorCores get work."""
    bp8 = _round_up(B, 8)
    if bp8 <= 512:
        return bp8
    half = _round_up(pl.cdiv(bp8, 2), 256)
    return min(tile_b_max, half)


def iris_mlp_forward(x, slab, *, tile_b_max=TILE_B_MAX):
    """x: [B, 4]; slab: output of pack_params. Returns logits [B, 3]."""
    B = x.shape[0]
    x = x.astype(jnp.float32)
    tile_b = _choose_tile(B, tile_b_max)
    grid = pl.cdiv(B, tile_b)

    out = pl.pallas_call(
        mlp_kernel,
        out_shape=jax.ShapeDtypeStruct((B, OUT_PAD), jnp.float32),
        grid=(grid,),
        in_specs=[
            pl.BlockSpec((tile_b, IN_F), lambda i: (i, 0)),           # batch-tiled x (ragged ok)
            pl.BlockSpec((SLAB_ROWS, SLAB_COLS), lambda i: (0, 0)),   # resident params
        ],
        out_specs=pl.BlockSpec((tile_b, OUT_PAD), lambda i: (i, 0)),  # narrow 8-lane output
        compiler_params=pltpu.CompilerParams(
            dimension_semantics=("parallel",)),
    )(x, slab)
    return out[:, :OUT_F]


def init_params(key, in_features=IN_F, h1=H1, h2=H2, out_features=OUT_F):
    """Mimics nn.Linear's U(-1/sqrt(fan_in), 1/sqrt(fan_in)) init.

    Weights stored as [in, out] (PyTorch weight transposed); biases as [out]."""
    def linear(key, fan_in, fan_out):
        kw, kb = jax.random.split(key)
        bound = 1.0 / jnp.sqrt(float(fan_in))
        w = jax.random.uniform(kw, (fan_in, fan_out), jnp.float32, -bound, bound)
        b = jax.random.uniform(kb, (fan_out,), jnp.float32, -bound, bound)
        return w, b

    k1, k2, k3 = jax.random.split(key, 3)
    w1, b1 = linear(k1, in_features, h1)
    w2, b2 = linear(k2, h1, h2)
    w3, b3 = linear(k3, h2, out_features)
    return w1, b1, w2, b2, w3, b3


if __name__ == "__main__":
    key = jax.random.PRNGKey(0)
    k_x, k_p = jax.random.split(key)

    w1, b1, w2, b2, w3, b3 = init_params(k_p)
    slab = pack_params(w1, b1, w2, b2, w3, b3)

    def ref_mlp(xv):
        h = jnp.maximum(xv @ w1 + b1, 0.0)
        h = jnp.maximum(h @ w2 + b2, 0.0)
        return h @ w3 + b3

    # Small Iris-like batch: 8 samples x 4 features (single grid step).
    B = 8
    x = jax.random.uniform(k_x, (B, IN_F), jnp.float32, 0.0, 8.0)
    out = jax.block_until_ready(iris_mlp_forward(x, slab))
    assert out.shape == (B, OUT_F)
    assert jnp.allclose(out, ref_mlp(x), atol=1e-4, rtol=1e-5)

    # Larger, non-multiple batch: exercises the 2-step grid + ragged last block.
    B2 = 1030
    x2 = jax.random.uniform(k_x, (B2, IN_F), jnp.float32, 0.0, 8.0)
    out2 = jax.block_until_ready(iris_mlp_forward(x2, slab))
    assert out2.shape == (B2, OUT_F)
    assert jnp.allclose(out2, ref_mlp(x2), atol=1e-4, rtol=1e-5)

    print("KERNEL_OK")
</pallas_src>

<mosaic_0001>
module attributes {stable_mosaic.version = 11 : i64} {
  func.func @mlp_kernel(%arg0: i32, %arg1: memref<8x4xf32, #tpu.memory_space<vmem>>, %arg2: memref<48x128xf32, #tpu.memory_space<vmem>>, %arg3: memref<8x8xf32, #tpu.memory_space<vmem>>) attributes {dimension_semantics = [#tpu.dimension_semantics<parallel>], iteration_bounds = array<i64: 1>, scalar_prefetch = 0 : i64, scratch_operands = 0 : i64, tpu.core_type = #tpu.core_type<tc>, window_params = [{transform_indices = @transform_0, window_bounds = array<i64: 8, 4>}, {pipeline_mode = #tpu.pipeline_mode<synchronous>, transform_indices = @transform_1, window_bounds = array<i64: 48, 128>}, {transform_indices = @transform_2, window_bounds = array<i64: 8, 8>}]} {
    %c0 = arith.constant 0 : index
    %c0_0 = arith.constant 0 : index
    %0 = vector.load %arg1[%c0, %c0_0] : memref<8x4xf32, #tpu.memory_space<vmem>>, vector<8x4xf32>
    %c0_1 = arith.constant 0 : index
    %c0_2 = arith.constant 0 : index
    %1 = vector.load %arg2[%c0_1, %c0_2] : memref<48x128xf32, #tpu.memory_space<vmem>>, vector<4x16xf32>
    %c8 = arith.constant 8 : index
    %c0_3 = arith.constant 0 : index
    %2 = vector.load %arg2[%c8, %c0_3] : memref<48x128xf32, #tpu.memory_space<vmem>>, vector<1x16xf32>
    %c16 = arith.constant 16 : index
    %c0_4 = arith.constant 0 : index
    %3 = vector.load %arg2[%c16, %c0_4] : memref<48x128xf32, #tpu.memory_space<vmem>>, vector<16x16xf32>
    %c32 = arith.constant 32 : index
    %c0_5 = arith.constant 0 : index
    %4 = vector.load %arg2[%c32, %c0_5] : memref<48x128xf32, #tpu.memory_space<vmem>>, vector<16x8xf32>
    %cst = arith.constant dense<0.000000e+00> : vector<8x16xf32>
    %5 = tpu.matmul %0, %1, %cst {dimension_numbers = #tpu.dot_dimension_numbers<[1], [0], [0], [1], [0, 0, 1, 1], [], []>} : vector<8x4xf32>, vector<4x16xf32>, vector<8x16xf32> -> vector<8x16xf32>
    %6 = vector.broadcast %2 : vector<1x16xf32> to vector<8x16xf32>
    %7 = arith.addf %5, %6 : vector<8x16xf32>
    %cst_6 = arith.constant 0.000000e+00 : f32
    %8 = vector.broadcast %cst_6 : f32 to vector<8x16xf32>
    %9 = arith.maximumf %7, %8 : vector<8x16xf32>
    %cst_7 = arith.constant dense<0.000000e+00> : vector<8x16xf32>
    %10 = tpu.matmul %9, %3, %cst_7 {dimension_numbers = #tpu.dot_dimension_numbers<[1], [0], [0], [1], [0, 0, 1, 1], [], []>} : vector<8x16xf32>, vector<16x16xf32>, vector<8x16xf32> -> vector<8x16xf32>
    %cst_8 = arith.constant 0.000000e+00 : f32
    %11 = vector.broadcast %cst_8 : f32 to vector<8x16xf32>
    %12 = arith.maximumf %10, %11 : vector<8x16xf32>
    %cst_9 = arith.constant dense<0.000000e+00> : vector<8x8xf32>
    %13 = tpu.matmul %12, %4, %cst_9 {dimension_numbers = #tpu.dot_dimension_numbers<[1], [0], [0], [1], [0, 0, 1, 1], [], []>} : vector<8x16xf32>, vector<16x8xf32>, vector<8x8xf32> -> vector<8x8xf32>
    %c0_10 = arith.constant 0 : index
    %c0_11 = arith.constant 0 : index
    %14 = vector.load %arg3[%c0_10, %c0_11] : memref<8x8xf32, #tpu.memory_space<vmem>>, vector<8x8xf32>
    tpu.vector_store %arg3[%c0_10, %c0_11], %13 {strides = array<i32>} : memref<8x8xf32, #tpu.memory_space<vmem>>, vector<8x8xf32>,
    return
  }
  func.func @transform_0(%arg0: i32) -> (i32, i32) {
    %c0_i32 = arith.constant 0 : i32
    %c0_i32_0 = arith.constant 0 : i32
    return %arg0, %c0_i32 : i32, i32
  }
  func.func @transform_1(%arg0: i32) -> (i32, i32) {
    %c0_i32 = arith.constant 0 : i32
    %c0_i32_0 = arith.constant 0 : i32
    %c0_i32_1 = arith.constant 0 : i32
    return %c0_i32, %c0_i32_0 : i32, i32
  }
  func.func @transform_2(%arg0: i32) -> (i32, i32) {
    %c0_i32 = arith.constant 0 : i32
    %c0_i32_0 = arith.constant 0 : i32
    return %arg0, %c0_i32 : i32, i32
  }
}

</mosaic_0001>

<llo_original>
// kernel: tpu_custom_call.1
$region0: #{tpu_custom_call.1}
  #allocation0 [shape = 'u32[]', space=smem, size = 0x4, offset = 0x4, fixed_abs, tag = 'smem constant byte address 0x4 - core index']
  #allocation1 [shape = 'u32[72,128]{1,0:T(1,128)}', space=vmem, size = 0x9000, scoped, tag = 'internal scratch']
  %s0 = inlined_call_operand.vmem [shape: f32[8,4], index: 0, kind: input, shape index: {}]
  %s1 = inlined_call_operand.hbm [shape: f32[48,128], index: 1, kind: input, shape index: {}]
  %s2 = inlined_call_operand.hbm [shape: f32[8,8], index: 2, kind: output, shape index: {}]
  %s3 = sld [smem:[#allocation0]]
  $region22: #{tpu_custom_call.1} parent=0
    _
  %s5 = ssub.s32 1, %s3
  %s6 = scalar_select 0, %s5, %s3
  $region1: #{tpu_custom_call.1} parent=0
    #allocation2 [shape = 'u8[24576]{0}', space=vmem, size = 0x6000, scoped, tag = 'input window, operand 1, single buffered']
    #allocation3 [shape = 's32[1]{0}', space=sflag, size = 0x4, scoped, tag = 'scoped memory for tpu_custom_call.1']
    #allocation4 [shape = 's32[1]{0}', space=sflag, size = 0x4, scoped, tag = 'scoped memory for tpu_custom_call.1']
    #allocation5 [shape = 'u8[4096]{0}', space=vmem, size = 0x1000, scoped, tag = 'output window, operand 0, single buffered']
    %7 = vsyncpa [#allocation3], 0
    %8 = vsyncpa [#allocation4], 0
    // Predicated region
    $region2: #{tpu_custom_call.1} parent=1 // pred_check
      _
    $region3: #{tpu_custom_call.1} parent=1 // pred_check_branch
      %10 = sbr.rel (0) target = $region5
    $region4: #{tpu_custom_call.1} parent=1 // pred_region
      _
    $region5: #{tpu_custom_call.1} parent=1 // pred_fallthru
      _
    // Predicated region
    $region6: #{tpu_custom_call.1} parent=1 // pred_check
      _
    $region7: #{tpu_custom_call.1} parent=1 // pred_check_branch
      %12 = sbr.rel (0) target = $region9
    $region8: #{tpu_custom_call.1} parent=1 // pred_region
      %14 = vsyncadd [#allocation3], 0
      %s15 = sshll.u32 %s1, 4
      %s16 = int_to_ptr.hbm [resolvable:$true] %s15
      %s17 = sshll.u32 [#allocation2], 4
      %s18 = int_to_ptr.vmem [resolvable:$true] %s17
      %23 = dma.hbm_to_vmem [thread:$0]  %s16, 768, %s18, [#allocation3], 128, 128, 8
    $region9: #{tpu_custom_call.1} parent=1 // pred_fallthru
      _
    // Predicated region
    $region10: #{tpu_custom_call.1} parent=1 // pred_check
      _
    $region11: #{tpu_custom_call.1} parent=1 // pred_check_branch
      %25 = sbr.rel (0) target = $region13
    $region12: #{tpu_custom_call.1} parent=1 // pred_region
      %27 = dma.done [#allocation3], 768
    $region13: #{tpu_custom_call.1} parent=1 // pred_fallthru
      _
    %v28 = vld [vmem:[%s0] sm:$0xff]
    %v29 = vld [vmem:[#allocation2] sm:$0xf]
    %v30 = vld [vmem:[#allocation2 + $0x8] sm:$0x1]
    %v31 = vld [vmem:[#allocation2 + $0x10] sm:$0xff]
    %v32 = vld [vmem:[#allocation2 + $0x18] sm:$0xff]
    %v33 = vld [vmem:[#allocation2 + $0x20] sm:$0xff]
    %v34 = vld [vmem:[#allocation2 + $0x28] sm:$0xff]
    %v35 = vperm.slane %v30, 0
    %vm36 = vcmask 31744
    %v38 = vsel %vm36, %v28, 0
    %vm40 = vcmask 1043456
    %v42 = vsel %vm40, %v29, 0
    %44 = vmatpush.msra.mxu0 0.0
    %45 = vmatpush.msra.mxu0 0.0
    %46 = vmatpush.msra.mxu0 0.0
    %47 = vmatpush.msra.mxu0 0.0
    %48 = vmatpush.msra.mxu0 0.0
    %49 = vmatpush.msra.mxu0 0.0
    %50 = vmatpush.msra.mxu0 0.0
    %51 = vmatpush.msra.mxu0 0.0
    %52 = vmatpush.msra.mxu0 0.0
    %53 = vmatpush.msra.mxu0 0.0
    %54 = vmatpush.msra.mxu0 0.0
    %55 = vmatpush.msra.mxu0 0.0
    %56 = vmatpush.msra.mxu0 0.0
    %57 = vmatpush.msra.mxu0 0.0
    %58 = vmatpush.msra.mxu0 0.0
    %59 = vmatpush.msra.mxu0 %v42
    %60 = vmatmul.f32.gmra.mxu0 %v38
    %v61 = vpop.f32.mrf.mxu0
    %v62 = vadd.f32 %v35, %v61
    %63 = vdwg.mxu0
    %v64 = vmax.f32 %v62, 0.0
    %vm65 = vcmask 130048
    %v67 = vsel %vm65, %v64, 0
    %69 = vmatpush.msra.mxu0 0.0
    %70 = vmatpush.msra.mxu0 0.0
    %71 = vmatpush.msra.mxu0 0.0
    %72 = vmatpush.msra.mxu0 0.0
    %73 = vmatpush.msra.mxu0 0.0
    %74 = vmatpush.msra.mxu0 0.0
    %75 = vmatpush.msra.mxu0 0.0
    %76 = vmatpush.msra.mxu0 0.0
    %77 = vmatpush.msra.mxu0 0.0
    %78 = vmatpush.msra.mxu0 0.0
    %79 = vmatpush.msra.mxu0 0.0
    %80 = vmatpush.msra.mxu0 0.0
    %81 = vmatpush.msra.mxu0 0.0
    %82 = vmatpush.msra.mxu0 0.0
    %83 = vmatpush.msra.mxu0 %v32
    %84 = vmatpush.msra.mxu0 %v31
    %85 = vmatmul.f32.gmra.mxu0 %v67
    %v86 = vpop.f32.mrf.mxu0
    %v87 = vadd.f32 0.0, %v86
    %88 = vdwg.mxu0
    %v89 = vmax.f32 %v87, 0.0
    %v91 = vsel %vm65, %v89, 0
    %93 = vmatpush.msra.mxu0 0.0
    %94 = vmatpush.msra.mxu0 0.0
    %95 = vmatpush.msra.mxu0 0.0
    %96 = vmatpush.msra.mxu0 0.0
    %97 = vmatpush.msra.mxu0 0.0
    %98 = vmatpush.msra.mxu0 0.0
    %99 = vmatpush.msra.mxu0 0.0
    %100 = vmatpush.msra.mxu0 0.0
    %101 = vmatpush.msra.mxu0 0.0
    %102 = vmatpush.msra.mxu0 0.0
    %103 = vmatpush.msra.mxu0 0.0
    %104 = vmatpush.msra.mxu0 0.0
    %105 = vmatpush.msra.mxu0 0.0
    %106 = vmatpush.msra.mxu0 0.0
    %107 = vmatpush.msra.mxu0 %v34
    %108 = vmatpush.msra.mxu0 %v33
    %109 = vmatmul.f32.gmra.mxu0 %v91
    %v110 = vpop.f32.mrf.mxu0
    %v111 = vadd.f32 0.0, %v110
    %112 = vdwg.mxu0
    %vm113 = vcmask 64512
    %114 = vst.msk [vmem:[#allocation5] sm:$0xff] %vm113, %v111
    // Predicated region
    $region14: #{tpu_custom_call.1} parent=1 // pred_check
      _
    $region15: #{tpu_custom_call.1} parent=1 // pred_check_branch
      %116 = sbr.rel (0) target = $region17
    $region16: #{tpu_custom_call.1} parent=1 // pred_region
      %118 = vsyncadd [#allocation4], 0
      %s120 = sshll.u32 [#allocation5], 4
      %s121 = int_to_ptr.vmem [resolvable:$true] %s120
      %s122 = sshll.u32 %s2, 4
      %s123 = int_to_ptr.hbm [resolvable:$true] %s122
      %125 = dma.vmem_to_hbm [thread:$0]  %s121, 128, %s123, [#allocation4]
    $region17: #{tpu_custom_call.1} parent=1 // pred_fallthru
      _
    // Predicated region
    $region18: #{tpu_custom_call.1} parent=1 // pred_check
      _
    $region19: #{tpu_custom_call.1} parent=1 // pred_check_branch
      %127 = sbr.rel (0) target = $region21
    $region20: #{tpu_custom_call.1} parent=1 // pred_region
      %129 = dma.done [#allocation4], 128
    $region21: #{tpu_custom_call.1} parent=1 // pred_fallthru
      _
    %130 = vsyncpa [#allocation3], 1
    %131 = vsyncpa [#allocation4], 1

</llo_original>
